<compile_context>
chip_gen: v7x
topology: tpu7x:2x2x1
jax: 0.10.0
libtpu: 0.0.40
codegen_flags: <defaults>
</compile_context>

<pallas_src>
import functools

import jax
import jax.numpy as jnp
from jax.experimental import pallas as pl
from jax.experimental.pallas import tpu as pltpu


def _ndvi_loss_kernel(logits_ref, tgt_ref, red_ref, nir_ref, part_ref, *,
                      alpha, num_classes, tile_rows, tiles_per_split,
                      valid_pixels, need_mask):
    s = pl.program_id(1)          # parallel split of the tile range (v7x 2-TC)
    t = pl.program_id(2)          # reduction axis (innermost, "arbitrary")

    @pl.when(t == 0)
    def _():
        part_ref[...] = jnp.zeros_like(part_ref)

    tgt = tgt_ref[...]                                    # (TR, 128) int32

    # ---- per-pixel cross entropy: logsumexp over classes minus picked logit.
    # Class axis is a small static leading dim -> unroll it in Python: every
    # step is dense (TR, 128) VPU/EUP work; no cross-lane reduce, no gather.
    l0 = logits_ref[0].astype(jnp.float32)                # (TR, 128)
    m = l0
    for c in range(1, num_classes):
        m = jnp.maximum(m, logits_ref[c].astype(jnp.float32))
    z = jnp.exp(l0 - m)
    picked = jnp.where(tgt == 0, l0, jnp.float32(0.0))
    for c in range(1, num_classes):
        lc = logits_ref[c].astype(jnp.float32)
        z = z + jnp.exp(lc - m)
        # Labels are one-hot over classes -> overwrite instead of add
        # (saves one VALU op per class per element; matters on VALU-bound v7x).
        picked = jnp.where(tgt == c, lc, picked)
    ce = m + jnp.log(z) - picked                          # (TR, 128)

    # ---- NDVI-derived weight, division-free.
    # ndvi = (nir-red)/(nir+red) (0 where denom == 0), clipped to [-1, 1];
    # weight = alpha iff ndvi in [0, 0.5]. Clipping never changes membership,
    # so the test reduces to a sign check + magnitude check (pure VPU):
    #   ndvi >= 0   <=>  diff * denom >= 0     (denom == 0 handled separately)
    #   ndvi <= 0.5 <=>  2*|diff| <= |denom|
    red = red_ref[...].astype(jnp.float32)
    nir = nir_ref[...].astype(jnp.float32)
    diff = nir - red
    denom = nir + red
    abs_diff2 = jnp.abs(diff) + jnp.abs(diff)
    in_range = (((diff * denom >= 0.0) & (abs_diff2 <= jnp.abs(denom)))
                | (denom == 0.0))            # denom == 0 -> ndvi = 0 -> in range
    weight = jnp.where(in_range, jnp.float32(alpha), jnp.float32(1.0))

    contrib = ce * weight                                 # (TR, 128)

    if need_mask:
        # Mask wrapper padding and the partial last tile by global pixel index.
        row = jax.lax.broadcasted_iota(jnp.int32, (tile_rows, 128), 0)
        lane = jax.lax.broadcasted_iota(jnp.int32, (tile_rows, 128), 1)
        start_row = (s * tiles_per_split + t) * tile_rows
        gidx = (start_row + row) * 128 + lane
        contrib = jnp.where(gidx < valid_pixels, contrib, jnp.float32(0.0))

    # ---- fold to a tiny lane-dense (8, 128) accumulator. The reshape only
    # regroups sublane-major vregs, and the axis-0 sum is pure VALU adds — no
    # XLU. Output HBM traffic drops to 4 KiB per (batch, split).
    part_ref[...] += jnp.sum(contrib.reshape(tile_rows // 8, 8, 128), axis=0)


def _pick_tile_rows(n_rows, n_classes, logit_bytes, image_bytes,
                    budget_bytes=8 * 1024 * 1024, rows_cap=2048):
    """Rows (of 128 pixels) per tile.

    `budget_bytes` bounds the double-buffered per-step input working set
    (logits + target + red + nir); `rows_cap` additionally bounds the VMEM the
    compiler needs for full-tile f32 intermediates.  ~8 MiB of blocks plus a
    few MiB of intermediates stays well under the 32 MiB limit requested below
    (v7x: 64 MiB physical / 32 MiB scoped default; v5e/v6e: 128 MiB physical).
    """
    per_row = 2 * 128 * (n_classes * logit_bytes + 4 + 2 * image_bytes)
    max_rows = min(rows_cap, max(16, budget_bytes // per_row))
    if n_rows <= max_rows:
        return n_rows                      # full extent is always a legal block
    return int((max_rows // 16) * 16)      # multiple of 16: bf16-friendly rows


def custom_ndvi_loss(output, target, image, alpha=2.0):
    """Pallas equivalent of CustomNDVILoss.forward.

    output: (B, C, H, W) float logits (f32 or bf16; DMA'd as-is, cast in-kernel)
    target: (B, H, W)    int labels in [0, C)
    image:  (B, Ch, H, W) with Ch >= 5 (band 3 = red, band 4 = nir)
    """
    B, C, H, W = output.shape
    _, CH, _, _ = image.shape
    assert CH >= 5, "image needs >= 5 channels (red = band 3, nir = band 4)"
    HW = H * W

    # Pad the flattened pixel axis to a multiple of 8*128 so tiles are always
    # (8,128)-aligned; padded pixels are masked out in-kernel. The pad is a
    # copy only when H*W is not already a multiple of 1024.
    HW_pad = ((HW + 1023) // 1024) * 1024
    pad = HW_pad - HW

    logits = output.reshape(B, C, HW)
    # TODO(synk): accept int8/uint8 targets end-to-end (cuts target HBM traffic
    # 4x); int32 is kept because sub-32-bit integer tiles constrain TR.
    tgt = target.reshape(B, HW).astype(jnp.int32)
    img = image.reshape(B, CH, HW)
    if pad:
        logits = jnp.pad(logits, ((0, 0), (0, 0), (0, pad)))
        tgt = jnp.pad(tgt, ((0, 0), (0, pad)))
        img = jnp.pad(img, ((0, 0), (0, 0), (0, pad)))

    R = HW_pad // 128
    logits = logits.reshape(B, C, R, 128)
    tgt = tgt.reshape(B, R, 128)
    img = img.reshape(B, CH, R, 128)

    TR = _pick_tile_rows(R, C, logits.dtype.itemsize, img.dtype.itemsize)
    NT = pl.cdiv(R, TR)                    # tiles per batch item
    # Split the tile range into 2 parallel halves when it divides evenly so both
    # v7x TensorCores have work even at B == 1 (no duplicated DMA traffic;
    # a no-op on single-TC v5e/v6e).
    S = 2 if NT % 2 == 0 else 1
    T = NT // S

    need_mask = (pad != 0) or (R % TR != 0)

    partials = pl.pallas_call(
        functools.partial(_ndvi_loss_kernel, alpha=float(alpha), num_classes=C,
                          tile_rows=TR, tiles_per_split=T,
                          valid_pixels=HW, need_mask=need_mask),
        out_shape=jax.ShapeDtypeStruct((B, S, 8, 128), jnp.float32),
        grid_spec=pltpu.PrefetchScalarGridSpec(
            num_scalar_prefetch=0,
            grid=(B, S, T),
            in_specs=[
                # logits (B, C, R, 128) -> kernel block (C, TR, 128)
                pl.BlockSpec((pl.Squeezed(), C, TR, 128),
                             lambda b, s, t: (b, 0, s * T + t, 0)),
                # target (B, R, 128) -> (TR, 128)
                pl.BlockSpec((pl.Squeezed(), TR, 128),
                             lambda b, s, t: (b, s * T + t, 0)),
                # red band: channel 3 gathered straight out of image by the DMA
                pl.BlockSpec((pl.Squeezed(), pl.Squeezed(), TR, 128),
                             lambda b, s, t: (b, 3, s * T + t, 0)),
                # nir band: channel 4
                pl.BlockSpec((pl.Squeezed(), pl.Squeezed(), TR, 128),
                             lambda b, s, t: (b, 4, s * T + t, 0)),
            ],
            # Tiny lane-dense per-(batch, split) accumulator, resident across t.
            out_specs=pl.BlockSpec((pl.Squeezed(), pl.Squeezed(), 8, 128),
                                   lambda b, s, t: (b, s, 0, 0)),
        ),
        compiler_params=pltpu.CompilerParams(
            dimension_semantics=("parallel", "parallel", "arbitrary"),
            vmem_limit_bytes=32 * 1024 * 1024),
    )(logits, tgt, img, img)

    return jnp.sum(partials) / jnp.float32(B * HW)


def _reference_loss(output, target, image, alpha=2.0):
    """Pure-JAX reference matching the PyTorch module semantics."""
    red = image[:, 3, :, :].astype(jnp.float32)
    nir = image[:, 4, :, :].astype(jnp.float32)
    denom = nir + red
    ndvi = jnp.where(denom != 0, (nir - red) / jnp.where(denom != 0, denom, 1.0), 0.0)
    ndvi = jnp.clip(ndvi, -1.0, 1.0)

    logits = output.astype(jnp.float32)                       # (B, C, H, W)
    logz = jax.nn.logsumexp(logits, axis=1)                   # (B, H, W)
    picked = jnp.take_along_axis(logits, target[:, None].astype(jnp.int32),
                                 axis=1)[:, 0]                # (B, H, W)
    ce = logz - picked

    weight = jnp.where((ndvi >= 0.0) & (ndvi <= 0.5), alpha, 1.0)
    return jnp.mean(ce * weight)


if __name__ == "__main__":
    key = jax.random.PRNGKey(0)
    k1, k2, k3 = jax.random.split(key, 3)

    B, C, H, W = 2, 4, 16, 16      # num_classes = 4, H*W = 256
    CH = 6                         # image channels (>= 5 so bands 3, 4 exist)

    output = jax.random.normal(k1, (B, C, H, W), dtype=jnp.float32)
    target = jax.random.randint(k2, (B, H, W), 0, C, dtype=jnp.int32)
    image = jax.random.normal(k3, (B, CH, H, W), dtype=jnp.float32)

    loss = custom_ndvi_loss(output, target, image, alpha=2.0)
    loss = jax.block_until_ready(loss)

    ref = _reference_loss(output, target, image, alpha=2.0)
    assert jnp.allclose(loss, ref, rtol=1e-5, atol=1e-5), (loss, ref)

    print("KERNEL_OK")
</pallas_src>

<mosaic_0001>
module attributes {stable_mosaic.version = 11 : i64} {
  func.func @_ndvi_loss_kernel(%arg0: i32, %arg1: i32, %arg2: i32, %arg3: memref<1x4x8x128xf32, #tpu.memory_space<vmem>>, %arg4: memref<1x8x128xi32, #tpu.memory_space<vmem>>, %arg5: memref<1x1x8x128xf32, #tpu.memory_space<vmem>>, %arg6: memref<1x1x8x128xf32, #tpu.memory_space<vmem>>, %arg7: memref<1x1x8x128xf32, #tpu.memory_space<vmem>>) attributes {dimension_semantics = [#tpu.dimension_semantics<parallel>, #tpu.dimension_semantics<parallel>, #tpu.dimension_semantics<arbitrary>], iteration_bounds = array<i64: 2, 1, 1>, scalar_prefetch = 0 : i64, scratch_operands = 0 : i64, tpu.core_type = #tpu.core_type<tc>, window_params = [{transform_indices = @transform_0, window_bounds = array<i64: 1, 4, 8, 128>}, {transform_indices = @transform_1, window_bounds = array<i64: 1, 8, 128>}, {transform_indices = @transform_2, window_bounds = array<i64: 1, 1, 8, 128>}, {transform_indices = @transform_3, window_bounds = array<i64: 1, 1, 8, 128>}, {transform_indices = @transform_4, window_bounds = array<i64: 1, 1, 8, 128>}]} {
    %c0_i32 = arith.constant 0 : i32
    %0 = arith.cmpi eq, %arg2, %c0_i32 : i32
    %1 = arith.extui %0 : i1 to i32
    %c0_i32_0 = arith.constant 0 : i32
    %2 = arith.cmpi ne, %1, %c0_i32_0 : i32
    scf.if %2 {
      %cst_52 = arith.constant 0.000000e+00 : f32
      %93 = vector.broadcast %cst_52 : f32 to vector<8x128xf32>
      %c0_53 = arith.constant 0 : index
      %c0_54 = arith.constant 0 : index
      %c0_55 = arith.constant 0 : index
      %c0_56 = arith.constant 0 : index
      %94 = vector.load %arg7[%c0_53, %c0_54, %c0_55, %c0_56] : memref<1x1x8x128xf32, #tpu.memory_space<vmem>>, vector<1x1x8x128xf32>
      %95 = vector.shape_cast %94 : vector<1x1x8x128xf32> to vector<8x128xf32>
      %96 = vector.shape_cast %93 : vector<8x128xf32> to vector<1x1x8x128xf32>
      tpu.vector_store %arg7[%c0_53, %c0_54, %c0_55, %c0_56], %96 {strides = array<i32>} : memref<1x1x8x128xf32, #tpu.memory_space<vmem>>, vector<1x1x8x128xf32>,
    } else {
    }
    %c0 = arith.constant 0 : index
    %c0_1 = arith.constant 0 : index
    %c0_2 = arith.constant 0 : index
    %3 = vector.load %arg4[%c0, %c0_1, %c0_2] : memref<1x8x128xi32, #tpu.memory_space<vmem>>, vector<1x8x128xi32>
    %4 = vector.shape_cast %3 : vector<1x8x128xi32> to vector<8x128xi32>
    %c0_3 = arith.constant 0 : index
    %c0_4 = arith.constant 0 : index
    %c0_5 = arith.constant 0 : index
    %c0_6 = arith.constant 0 : index
    %5 = vector.load %arg3[%c0_3, %c0_4, %c0_5, %c0_6] : memref<1x4x8x128xf32, #tpu.memory_space<vmem>>, vector<1x1x8x128xf32>
    %6 = vector.shape_cast %5 : vector<1x1x8x128xf32> to vector<8x128xf32>
    %c0_7 = arith.constant 0 : index
    %c1 = arith.constant 1 : index
    %c0_8 = arith.constant 0 : index
    %c0_9 = arith.constant 0 : index
    %7 = vector.load %arg3[%c0_7, %c1, %c0_8, %c0_9] : memref<1x4x8x128xf32, #tpu.memory_space<vmem>>, vector<1x1x8x128xf32>
    %8 = vector.shape_cast %7 : vector<1x1x8x128xf32> to vector<8x128xf32>
    %9 = arith.maximumf %6, %8 : vector<8x128xf32>
    %c0_10 = arith.constant 0 : index
    %c2 = arith.constant 2 : index
    %c0_11 = arith.constant 0 : index
    %c0_12 = arith.constant 0 : index
    %10 = vector.load %arg3[%c0_10, %c2, %c0_11, %c0_12] : memref<1x4x8x128xf32, #tpu.memory_space<vmem>>, vector<1x1x8x128xf32>
    %11 = vector.shape_cast %10 : vector<1x1x8x128xf32> to vector<8x128xf32>
    %12 = arith.maximumf %9, %11 : vector<8x128xf32>
    %c0_13 = arith.constant 0 : index
    %c3 = arith.constant 3 : index
    %c0_14 = arith.constant 0 : index
    %c0_15 = arith.constant 0 : index
    %13 = vector.load %arg3[%c0_13, %c3, %c0_14, %c0_15] : memref<1x4x8x128xf32, #tpu.memory_space<vmem>>, vector<1x1x8x128xf32>
    %14 = vector.shape_cast %13 : vector<1x1x8x128xf32> to vector<8x128xf32>
    %15 = arith.maximumf %12, %14 : vector<8x128xf32>
    %16 = arith.subf %6, %15 : vector<8x128xf32>
    %17 = math.exp %16 : vector<8x128xf32>
    %c0_i32_16 = arith.constant 0 : i32
    %18 = vector.broadcast %c0_i32_16 : i32 to vector<8x128xi32>
    %19 = arith.cmpi eq, %4, %18 : vector<8x128xi32>
    %cst = arith.constant 0.000000e+00 : f32
    %20 = vector.broadcast %cst : f32 to vector<8x128xf32>
    %21 = arith.select %19, %6, %20 : vector<8x128xi1>, vector<8x128xf32>
    %c0_17 = arith.constant 0 : index
    %c1_18 = arith.constant 1 : index
    %c0_19 = arith.constant 0 : index
    %c0_20 = arith.constant 0 : index
    %22 = vector.load %arg3[%c0_17, %c1_18, %c0_19, %c0_20] : memref<1x4x8x128xf32, #tpu.memory_space<vmem>>, vector<1x1x8x128xf32>
    %23 = vector.shape_cast %22 : vector<1x1x8x128xf32> to vector<8x128xf32>
    %24 = arith.subf %23, %15 : vector<8x128xf32>
    %25 = math.exp %24 : vector<8x128xf32>
    %26 = arith.addf %17, %25 : vector<8x128xf32>
    %c1_i32 = arith.constant 1 : i32
    %27 = vector.broadcast %c1_i32 : i32 to vector<8x128xi32>
    %28 = arith.cmpi eq, %4, %27 : vector<8x128xi32>
    %29 = arith.select %28, %23, %21 : vector<8x128xi1>, vector<8x128xf32>
    %c0_21 = arith.constant 0 : index
    %c2_22 = arith.constant 2 : index
    %c0_23 = arith.constant 0 : index
    %c0_24 = arith.constant 0 : index
    %30 = vector.load %arg3[%c0_21, %c2_22, %c0_23, %c0_24] : memref<1x4x8x128xf32, #tpu.memory_space<vmem>>, vector<1x1x8x128xf32>
    %31 = vector.shape_cast %30 : vector<1x1x8x128xf32> to vector<8x128xf32>
    %32 = arith.subf %31, %15 : vector<8x128xf32>
    %33 = math.exp %32 : vector<8x128xf32>
    %34 = arith.addf %26, %33 : vector<8x128xf32>
    %c2_i32 = arith.constant 2 : i32
    %35 = vector.broadcast %c2_i32 : i32 to vector<8x128xi32>
    %36 = arith.cmpi eq, %4, %35 : vector<8x128xi32>
    %37 = arith.select %36, %31, %29 : vector<8x128xi1>, vector<8x128xf32>
    %c0_25 = arith.constant 0 : index
    %c3_26 = arith.constant 3 : index
    %c0_27 = arith.constant 0 : index
    %c0_28 = arith.constant 0 : index
    %38 = vector.load %arg3[%c0_25, %c3_26, %c0_27, %c0_28] : memref<1x4x8x128xf32, #tpu.memory_space<vmem>>, vector<1x1x8x128xf32>
    %39 = vector.shape_cast %38 : vector<1x1x8x128xf32> to vector<8x128xf32>
    %40 = arith.subf %39, %15 : vector<8x128xf32>
    %41 = math.exp %40 : vector<8x128xf32>
    %42 = arith.addf %34, %41 : vector<8x128xf32>
    %c3_i32 = arith.constant 3 : i32
    %43 = vector.broadcast %c3_i32 : i32 to vector<8x128xi32>
    %44 = arith.cmpi eq, %4, %43 : vector<8x128xi32>
    %45 = arith.select %44, %39, %37 : vector<8x128xi1>, vector<8x128xf32>
    %46 = math.log %42 : vector<8x128xf32>
    %47 = arith.addf %15, %46 : vector<8x128xf32>
    %48 = arith.subf %47, %45 : vector<8x128xf32>
    %c0_29 = arith.constant 0 : index
    %c0_30 = arith.constant 0 : index
    %c0_31 = arith.constant 0 : index
    %c0_32 = arith.constant 0 : index
    %49 = vector.load %arg5[%c0_29, %c0_30, %c0_31, %c0_32] : memref<1x1x8x128xf32, #tpu.memory_space<vmem>>, vector<1x1x8x128xf32>
    %50 = vector.shape_cast %49 : vector<1x1x8x128xf32> to vector<8x128xf32>
    %c0_33 = arith.constant 0 : index
    %c0_34 = arith.constant 0 : index
    %c0_35 = arith.constant 0 : index
    %c0_36 = arith.constant 0 : index
    %51 = vector.load %arg6[%c0_33, %c0_34, %c0_35, %c0_36] : memref<1x1x8x128xf32, #tpu.memory_space<vmem>>, vector<1x1x8x128xf32>
    %52 = vector.shape_cast %51 : vector<1x1x8x128xf32> to vector<8x128xf32>
    %53 = arith.subf %52, %50 : vector<8x128xf32>
    %54 = arith.addf %52, %50 : vector<8x128xf32>
    %55 = math.absf %53 : vector<8x128xf32>
    %56 = math.absf %53 : vector<8x128xf32>
    %57 = arith.addf %55, %56 : vector<8x128xf32>
    %58 = arith.mulf %53, %54 : vector<8x128xf32>
    %cst_37 = arith.constant 0.000000e+00 : f32
    %59 = vector.broadcast %cst_37 : f32 to vector<8x128xf32>
    %60 = arith.cmpf oge, %58, %59 : vector<8x128xf32>
    %61 = math.absf %54 : vector<8x128xf32>
    %62 = arith.cmpf ole, %57, %61 : vector<8x128xf32>
    %63 = arith.andi %60, %62 : vector<8x128xi1>
    %cst_38 = arith.constant 0.000000e+00 : f32
    %64 = vector.broadcast %cst_38 : f32 to vector<8x128xf32>
    %65 = arith.cmpf oeq, %54, %64 : vector<8x128xf32>
    %66 = arith.ori %63, %65 : vector<8x128xi1>
    %cst_39 = arith.constant 2.000000e+00 : f32
    %cst_40 = arith.constant 1.000000e+00 : f32
    %67 = vector.broadcast %cst_39 : f32 to vector<8x128xf32>
    %68 = vector.broadcast %cst_40 : f32 to vector<8x128xf32>
    %69 = arith.select %66, %67, %68 : vector<8x128xi1>, vector<8x128xf32>
    %70 = arith.mulf %48, %69 : vector<8x128xf32>
    %71 = tpu.iota {dimensions = array<i32: 0>} : vector<8x128xi32>
    %72 = tpu.iota {dimensions = array<i32: 1>} : vector<8x128xi32>
    %c1_i32_41 = arith.constant 1 : i32
    %73 = arith.muli %arg1, %c1_i32_41 : i32
    %74 = arith.addi %73, %arg2 : i32
    %c8_i32 = arith.constant 8 : i32
    %75 = arith.muli %74, %c8_i32 : i32
    %76 = vector.broadcast %75 : i32 to vector<8x128xi32>
    %77 = arith.addi %76, %71 : vector<8x128xi32>
    %c128_i32 = arith.constant 128 : i32
    %78 = vector.broadcast %c128_i32 : i32 to vector<8x128xi32>
    %79 = arith.muli %77, %78 : vector<8x128xi32>
    %80 = arith.addi %79, %72 : vector<8x128xi32>
    %c256_i32 = arith.constant 256 : i32
    %81 = vector.broadcast %c256_i32 : i32 to vector<8x128xi32>
    %82 = arith.cmpi slt, %80, %81 : vector<8x128xi32>
    %cst_42 = arith.constant 0.000000e+00 : f32
    %83 = vector.broadcast %cst_42 : f32 to vector<8x128xf32>
    %84 = arith.select %82, %70, %83 : vector<8x128xi1>, vector<8x128xf32>
    %c0_43 = arith.constant 0 : index
    %c0_44 = arith.constant 0 : index
    %c0_45 = arith.constant 0 : index
    %c0_46 = arith.constant 0 : index
    %85 = vector.load %arg7[%c0_43, %c0_44, %c0_45, %c0_46] : memref<1x1x8x128xf32, #tpu.memory_space<vmem>>, vector<1x1x8x128xf32>
    %86 = vector.shape_cast %85 : vector<1x1x8x128xf32> to vector<8x128xf32>
    %87 = vector.shape_cast %84 : vector<8x128xf32> to vector<1x8x128xf32>
    %cst_47 = arith.constant dense<0.000000e+00> : vector<8x128xf32>
    %88 = vector.multi_reduction <add>, %87, %cst_47 [0] : vector<1x8x128xf32> to vector<8x128xf32>
    %89 = arith.addf %86, %88 : vector<8x128xf32>
    %c0_48 = arith.constant 0 : index
    %c0_49 = arith.constant 0 : index
    %c0_50 = arith.constant 0 : index
    %c0_51 = arith.constant 0 : index
    %90 = vector.load %arg7[%c0_48, %c0_49, %c0_50, %c0_51] : memref<1x1x8x128xf32, #tpu.memory_space<vmem>>, vector<1x1x8x128xf32>
    %91 = vector.shape_cast %90 : vector<1x1x8x128xf32> to vector<8x128xf32>
    %92 = vector.shape_cast %89 : vector<8x128xf32> to vector<1x1x8x128xf32>
    tpu.vector_store %arg7[%c0_48, %c0_49, %c0_50, %c0_51], %92 {strides = array<i32>} : memref<1x1x8x128xf32, #tpu.memory_space<vmem>>, vector<1x1x8x128xf32>,
    return
  }
  func.func @transform_0(%arg0: i32, %arg1: i32, %arg2: i32) -> (i32, i32, i32, i32) {
    %c1_i32 = arith.constant 1 : i32
    %0 = arith.muli %arg1, %c1_i32 : i32
    %1 = arith.addi %0, %arg2 : i32
    %c0_i32 = arith.constant 0 : i32
    %c0_i32_0 = arith.constant 0 : i32
    %c0_i32_1 = arith.constant 0 : i32
    return %arg0, %c0_i32, %1, %c0_i32_0 : i32, i32, i32, i32
  }
  func.func @transform_1(%arg0: i32, %arg1: i32, %arg2: i32) -> (i32, i32, i32) {
    %c1_i32 = arith.constant 1 : i32
    %0 = arith.muli %arg1, %c1_i32 : i32
    %1 = arith.addi %0, %arg2 : i32
    %c0_i32 = arith.constant 0 : i32
    %c0_i32_0 = arith.constant 0 : i32
    return %arg0, %1, %c0_i32 : i32, i32, i32
  }
  func.func @transform_2(%arg0: i32, %arg1: i32, %arg2: i32) -> (i32, i32, i32, i32) {
    %c1_i32 = arith.constant 1 : i32
    %0 = arith.muli %arg1, %c1_i32 : i32
    %1 = arith.addi %0, %arg2 : i32
    %c3_i32 = arith.constant 3 : i32
    %c0_i32 = arith.constant 0 : i32
    %c0_i32_0 = arith.constant 0 : i32
    return %arg0, %c3_i32, %1, %c0_i32 : i32, i32, i32, i32
  }
  func.func @transform_3(%arg0: i32, %arg1: i32, %arg2: i32) -> (i32, i32, i32, i32) {
    %c1_i32 = arith.constant 1 : i32
    %0 = arith.muli %arg1, %c1_i32 : i32
    %1 = arith.addi %0, %arg2 : i32
    %c4_i32 = arith.constant 4 : i32
    %c0_i32 = arith.constant 0 : i32
    %c0_i32_0 = arith.constant 0 : i32
    return %arg0, %c4_i32, %1, %c0_i32 : i32, i32, i32, i32
  }
  func.func @transform_4(%arg0: i32, %arg1: i32, %arg2: i32) -> (i32, i32, i32, i32) {
    %c0_i32 = arith.constant 0 : i32
    %c0_i32_0 = arith.constant 0 : i32
    %c0_i32_1 = arith.constant 0 : i32
    return %arg0, %arg1, %c0_i32, %c0_i32_0 : i32, i32, i32, i32
  }
}

</mosaic_0001>

<llo_original>
// kernel: tpu_custom_call.1
$region0: #{tpu_custom_call.1}
  #allocation0 [shape = 'u32[]', space=smem, size = 0x4, offset = 0x4, fixed_abs, tag = 'smem constant byte address 0x4 - core index']
  #allocation1 [shape = 'u32[144,128]{1,0:T(1,128)}', space=vmem, size = 0x12000, scoped, tag = 'internal scratch']
  %s0 = inlined_call_operand.hbm [shape: f32[2,4,8,128], index: 0, kind: input, shape index: {}]
  %s1 = inlined_call_operand.hbm [shape: s32[2,8,128], index: 1, kind: input, shape index: {}]
  %s2 = inlined_call_operand.hbm [shape: f32[2,6,8,128], index: 2, kind: input, shape index: {}]
  %s3 = inlined_call_operand.hbm [shape: f32[2,6,8,128], index: 3, kind: input, shape index: {}]
  %s4 = inlined_call_operand.hbm [shape: f32[2,1,8,128], index: 4, kind: output, shape index: {}]
  %s5 = sld [smem:[#allocation0]]
  $region69: #{tpu_custom_call.1} parent=0
    _
  %s7 = ssub.s32 1, %s5
  %s8 = scalar_select 0, %s7, %s5
  $region1: #{tpu_custom_call.1} parent=0
    #allocation2 [shape = 'u8[32768]{0}', space=vmem, size = 0x8000, scoped, tag = 'input window, operand 0']
    #allocation3 [shape = 's32[2]{0}', space=sflag, size = 0x8, scoped, tag = 'scoped memory for tpu_custom_call.1']
    #allocation4 [shape = 's32[2]{0}', space=sflag, size = 0x8, scoped, tag = 'scoped memory for tpu_custom_call.1']
    #allocation5 [shape = 'u8[8192]{0}', space=vmem, size = 0x2000, scoped, tag = 'input window, operand 1']
    #allocation6 [shape = 's32[2]{0}', space=sflag, size = 0x8, scoped, tag = 'scoped memory for tpu_custom_call.1']
    #allocation7 [shape = 'u8[8192]{0}', space=vmem, size = 0x2000, scoped, tag = 'input window, operand 2']
    #allocation8 [shape = 'u8[8192]{0}', space=vmem, size = 0x2000, scoped, tag = 'input window, operand 3']
    #allocation9 [shape = 's32[2]{0}', space=sflag, size = 0x8, scoped, tag = 'scoped memory for tpu_custom_call.1']
    #allocation10 [shape = 'u8[8192]{0}', space=vmem, size = 0x2000, scoped, tag = 'output window, operand 0']
    %9 = vsyncpa [#allocation3], 0
    %s10 = scalar_lea.sflag [#allocation3], 1
    %11 = vsyncpa %s10, 0
    %12 = vsyncpa [#allocation6], 0
    %s13 = scalar_lea.sflag [#allocation6], 1
    %14 = vsyncpa %s13, 0
    %15 = vsyncpa [#allocation9], 0
    %s16 = scalar_lea.sflag [#allocation9], 1
    %17 = vsyncpa %s16, 0
    %18 = vsyncpa [#allocation4], 0
    %s19 = scalar_lea.sflag [#allocation4], 1
    %20 = vsyncpa %s19, 0
    loop: start=0, step=1, limit=4
    $region2: #{tpu_custom_call.1} parent=1 // loop_pre_header
      _
    $region3: #{tpu_custom_call.1} parent=1 // loop_header
      %s22 = sphi 0, %s26
      %p23 = scmp.ge.s32.totalorder %s22, 4
      %s29 = sphi 0, %s48
      %s30 = sphi 0, %s44
      %s31 = sphi 0, %s40
      %s32 = sphi 0, %s29
      %s33 = sphi 0, %s30
      %s34 = sphi 0, %s31
      %s35 = sphi 0, %s32
      %s36 = sphi 0, %s33
      %s37 = sphi 0, %s34
      %s55 = sphi 0, %s57
      %s58 = sphi 0, %s55
      %s59 = sphi 0, %s58
      %s75 = sphi 0, %s59
      %s85 = sphi 0, %s87
      %s88 = sphi 0, %s85
      %s89 = sphi 0, %s88
      %s105 = sphi 0, %s89
      %s115 = sphi 0, %s117
      %s118 = sphi 0, %s115
      %s119 = sphi 0, %s118
      %s135 = sphi 0, %s119
      %s145 = sphi 0, %s147
      %s148 = sphi 0, %s145
      %s149 = sphi 0, %s148
      %s165 = sphi 0, %s149
      %s173 = sphi 0, %s175
      %s176 = sphi 0, %s173
      %s177 = sphi 0, %s176
      %s193 = sphi 0, %s177
    $region4: #{tpu_custom_call.1} parent=1 // loop_header_branch
      %25 = sbr.rel (%p23) target = $region8
    $region5: #{tpu_custom_call.1} parent=1 // loop_body
      %s27 = ssub.s32 %s22, 1
      %s28 = ssub.s32 %s22, 2
      %s38 = sadd.s32 1, %s31
      %p39 = scmp.ge.s32.totalorder %s38, 1
      %s40 = scalar_select %p39, 0, %s38
      %s41 = sadd.s32 1, %s30
      %s42 = scalar_select %p39, %s41, %s30
      %p43 = scmp.ge.s32.totalorder %s42, 1
      %s44 = scalar_select %p43, 0, %s42
      %s45 = sadd.s32 1, %s29
      %s46 = scalar_select %p43, %s45, %s29
      %p47 = scmp.ge.s32.totalorder %s46, 2
      %s48 = scalar_select %p47, 0, %s46
      %s49 = sadd.s32 %s30, %s31
      %s50 = sadd.s32 %s44, %s40
      %s51 = ssub.s32 %s29, %s48
      %s52 = ssub.s32 %s49, %s50
      %s53 = sor.u32 %s51, %s52
      %p54 = scmp.eq.s32.totalorder %s53, 0
      %s56 = sadd.s32 %s55, 1
      %s57 = scalar_select %p54, %s55, %s56
      %p60 = pneg %p54
      %p61 = scmp.eq.s32.totalorder %s22, 1
      %p62 = por %p60, %p61
      %p63 = scmp.ne.s32.totalorder %s55, %s58
      %p64 = scmp.eq.s32.totalorder %s22, 0
      %p65 = por %p63, %p64
      %p66 = scmp.ne.s32.totalorder %s55, %s58
      %p67 = scmp.eq.s32.totalorder %s27, 1
      %p68 = por %p66, %p67
      %p69 = scmp.ne.s32.totalorder %s58, %s59
      %p70 = scmp.eq.s32.totalorder %s27, 0
      %p71 = por %p69, %p70
      %p72 = scmp.ne.s32.totalorder %s58, %s59
      %p73 = scmp.eq.s32.totalorder %s28, 1
      %p74 = por %p72, %p73
      %p76 = scmp.ne.s32.totalorder %s59, %s75
      %p77 = scmp.eq.s32.totalorder %s28, 0
      %p78 = por %p76, %p77
      %s79 = sadd.s32 %s30, %s31
      %s80 = sadd.s32 %s44, %s40
      %s81 = ssub.s32 %s29, %s48
      %s82 = ssub.s32 %s79, %s80
      %s83 = sor.u32 %s81, %s82
      %p84 = scmp.eq.s32.totalorder %s83, 0
      %s86 = sadd.s32 %s85, 1
      %s87 = scalar_select %p84, %s85, %s86
      %p90 = pneg %p84
      %p91 = scmp.eq.s32.totalorder %s22, 1
      %p92 = por %p90, %p91
      %p93 = scmp.ne.s32.totalorder %s85, %s88
      %p94 = scmp.eq.s32.totalorder %s22, 0
      %p95 = por %p93, %p94
      %p96 = scmp.ne.s32.totalorder %s85, %s88
      %p97 = scmp.eq.s32.totalorder %s27, 1
      %p98 = por %p96, %p97
      %p99 = scmp.ne.s32.totalorder %s88, %s89
      %p100 = scmp.eq.s32.totalorder %s27, 0
      %p101 = por %p99, %p100
      %p102 = scmp.ne.s32.totalorder %s88, %s89
      %p103 = scmp.eq.s32.totalorder %s28, 1
      %p104 = por %p102, %p103
      %p106 = scmp.ne.s32.totalorder %s89, %s105
      %p107 = scmp.eq.s32.totalorder %s28, 0
      %p108 = por %p106, %p107
      %s109 = sadd.s32 %s30, %s31
      %s110 = sadd.s32 %s44, %s40
      %s111 = ssub.s32 %s29, %s48
      %s112 = ssub.s32 %s109, %s110
      %s113 = sor.u32 %s111, %s112
      %p114 = scmp.eq.s32.totalorder %s113, 0
      %s116 = sadd.s32 %s115, 1
      %s117 = scalar_select %p114, %s115, %s116
      %p120 = pneg %p114
      %p121 = scmp.eq.s32.totalorder %s22, 1
      %p122 = por %p120, %p121
      %p123 = scmp.ne.s32.totalorder %s115, %s118
      %p124 = scmp.eq.s32.totalorder %s22, 0
      %p125 = por %p123, %p124
      %p126 = scmp.ne.s32.totalorder %s115, %s118
      %p127 = scmp.eq.s32.totalorder %s27, 1
      %p128 = por %p126, %p127
      %p129 = scmp.ne.s32.totalorder %s118, %s119
      %p130 = scmp.eq.s32.totalorder %s27, 0
      %p131 = por %p129, %p130
      %p132 = scmp.ne.s32.totalorder %s118, %s119
      %p133 = scmp.eq.s32.totalorder %s28, 1
      %p134 = por %p132, %p133
      %p136 = scmp.ne.s32.totalorder %s119, %s135
      %p137 = scmp.eq.s32.totalorder %s28, 0
      %p138 = por %p136, %p137
      %s139 = sadd.s32 %s30, %s31
      %s140 = sadd.s32 %s44, %s40
      %s141 = ssub.s32 %s29, %s48
      %s142 = ssub.s32 %s139, %s140
      %s143 = sor.u32 %s141, %s142
      %p144 = scmp.eq.s32.totalorder %s143, 0
      %s146 = sadd.s32 %s145, 1
      %s147 = scalar_select %p144, %s145, %s146
      %p150 = pneg %p144
      %p151 = scmp.eq.s32.totalorder %s22, 1
      %p152 = por %p150, %p151
      %p153 = scmp.ne.s32.totalorder %s145, %s148
      %p154 = scmp.eq.s32.totalorder %s22, 0
      %p155 = por %p153, %p154
      %p156 = scmp.ne.s32.totalorder %s145, %s148
      %p157 = scmp.eq.s32.totalorder %s27, 1
      %p158 = por %p156, %p157
      %p159 = scmp.ne.s32.totalorder %s148, %s149
      %p160 = scmp.eq.s32.totalorder %s27, 0
      %p161 = por %p159, %p160
      %p162 = scmp.ne.s32.totalorder %s148, %s149
      %p163 = scmp.eq.s32.totalorder %s28, 1
      %p164 = por %p162, %p163
      %p166 = scmp.ne.s32.totalorder %s149, %s165
      %p167 = scmp.eq.s32.totalorder %s28, 0
      %p168 = por %p166, %p167
      %s169 = ssub.s32 %s29, %s48
      %s170 = ssub.s32 %s30, %s44
      %s171 = sor.u32 %s169, %s170
      %p172 = scmp.eq.s32.totalorder %s171, 0
      %s174 = sadd.s32 %s173, 1
      %s175 = scalar_select %p172, %s173, %s174
      %p178 = pneg %p172
      %p179 = scmp.eq.s32.totalorder %s22, 1
      %p180 = por %p178, %p179
      %p181 = scmp.ne.s32.totalorder %s173, %s176
      %p182 = scmp.eq.s32.totalorder %s22, 0
      %p183 = por %p181, %p182
      %p184 = scmp.ne.s32.totalorder %s173, %s176
      %p185 = scmp.eq.s32.totalorder %s27, 1
      %p186 = por %p184, %p185
      %p187 = scmp.ne.s32.totalorder %s176, %s177
      %p188 = scmp.eq.s32.totalorder %s27, 0
      %p189 = por %p187, %p188
      %p190 = scmp.ne.s32.totalorder %s176, %s177
      %p191 = scmp.eq.s32.totalorder %s28, 1
      %p192 = por %p190, %p191
      %p194 = scmp.ne.s32.totalorder %s177, %s193
      %p195 = scmp.eq.s32.totalorder %s28, 0
      %p196 = por %p194, %p195
      %p197 = scmp.le.s32.totalorder 1, %s22
      %p198 = scmp.lt.s32.totalorder %s22, 3
      %p199 = pnand %p197, %p198
      %p200 = pneg %p199
      // Predicated region
      $region9: #{tpu_custom_call.1} parent=5 // pred_check
        _
      $region10: #{tpu_custom_call.1} parent=5 // pred_check_branch
        %202 = sbr.rel (%p199) target = $region12
      $region11: #{tpu_custom_call.1} parent=5 // pred_region
        %s203 = ssub.s32 %s22, 1
      $region12: #{tpu_custom_call.1} parent=5 // pred_fallthru
        _
      %p204 = scmp.lt.s32.totalorder %s22, 2
      // Predicated region
      $region13: #{tpu_custom_call.1} parent=5 // pred_check
        %p205 = pneg %p204
      $region14: #{tpu_custom_call.1} parent=5 // pred_check_branch
        %207 = sbr.rel (%p205) target = $region16
      $region15: #{tpu_custom_call.1} parent=5 // pred_region
        // Predicated region
        $region17: #{tpu_custom_call.1} parent=15 // pred_check
          %p208 = pneg %p65
        $region18: #{tpu_custom_call.1} parent=15 // pred_check_branch
          %210 = sbr.rel (%p208) target = $region20
        $region19: #{tpu_custom_call.1} parent=15 // pred_region
          %s211 = sand.u32 %s55, 1
          %s212 = scalar_lea.sflag [#allocation3], %s211
          %s213 = sand.u32 %s55, 1
          %s214 = smul.addr %s213, 32
          %s215 = scalar_lea.vmem [#allocation2], %s214
          %s216 = sadd.s32 %s30, %s31
          %s218 = ssub.s32 512, 512
          %219 = vsyncadd %s212, %s218
          %s220 = smul.addr %s29, 4
          %s221 = sadd.s32 %s216, %s220
          %s222 = smul.addr %s221, 128
          %s223 = scalar_lea.hbm %s0, %s222
          %s224 = sshll.u32 %s215, 4
          %s225 = int_to_ptr.vmem [resolvable:$true] %s224
          %230 = dma.hbm_to_vmem [thread:$0]  %s223, 512, %s225, %s212, 128, 128, 8
        $region20: #{tpu_custom_call.1} parent=15 // pred_fallthru
          _
        // Predicated region
        $region21: #{tpu_custom_call.1} parent=15 // pred_check
          %p231 = pneg %p95
        $region22: #{tpu_custom_call.1} parent=15 // pred_check_branch
          %233 = sbr.rel (%p231) target = $region24
        $region23: #{tpu_custom_call.1} parent=15 // pred_region
          %s234 = sand.u32 %s22, 1
          %s235 = scalar_lea.sflag [#allocation6], %s234
          %s236 = sand.u32 %s85, 1
          %s237 = smul.addr %s236, 8
          %s238 = scalar_lea.vmem [#allocation5], %s237
          %s239 = sadd.s32 %s30, %s31
          %s241 = ssub.s32 128, 128
          %242 = vsyncadd %s235, %s241
          %s243 = sadd.s32 %s239, %s29
          %s244 = smul.addr %s243, 128
          %s245 = scalar_lea.hbm %s1, %s244
          %s247 = sshll.u32 %s238, 4
          %s248 = int_to_ptr.vmem [resolvable:$true] %s247
          %250 = dma.hbm_to_vmem [thread:$0]  %s245, 128, %s248, %s235
        $region24: #{tpu_custom_call.1} parent=15 // pred_fallthru
          _
        // Predicated region
        $region25: #{tpu_custom_call.1} parent=15 // pred_check
          %p251 = pneg %p125
        $region26: #{tpu_custom_call.1} parent=15 // pred_check_branch
          %253 = sbr.rel (%p251) target = $region28
        $region27: #{tpu_custom_call.1} parent=15 // pred_region
          %s254 = sand.u32 %s22, 1
          %s255 = scalar_lea.sflag [#allocation6], %s254
          %s256 = sand.u32 %s115, 1
          %s257 = smul.addr %s256, 8
          %s258 = scalar_lea.vmem [#allocation7], %s257
          %s259 = sadd.s32 %s30, %s31
          %s261 = ssub.s32 128, 128
          %262 = vsyncadd %s255, %s261
          %s263 = sadd.s32 %s259, 3
          %s264 = smul.addr %s29, 6
          %s265 = sadd.s32 %s263, %s264
          %s266 = smul.addr %s265, 128
          %s267 = scalar_lea.hbm %s2, %s266
          %s269 = sshll.u32 %s258, 4
          %s270 = int_to_ptr.vmem [resolvable:$true] %s269
          %272 = dma.hbm_to_vmem [thread:$0]  %s267, 128, %s270, %s255
        $region28: #{tpu_custom_call.1} parent=15 // pred_fallthru
          _
        // Predicated region
        $region29: #{tpu_custom_call.1} parent=15 // pred_check
          %p273 = pneg %p155
        $region30: #{tpu_custom_call.1} parent=15 // pred_check_branch
          %275 = sbr.rel (%p273) target = $region32
        $region31: #{tpu_custom_call.1} parent=15 // pred_region
          %s276 = sand.u32 %s145, 1
          %s277 = scalar_lea.sflag [#allocation9], %s276
          %s278 = sand.u32 %s145, 1
          %s279 = smul.addr %s278, 8
          %s280 = scalar_lea.vmem [#allocation8], %s279
          %s281 = sadd.s32 %s30, %s31
          %s283 = ssub.s32 128, 128
          %284 = vsyncadd %s277, %s283
          %s285 = sadd.s32 %s281, 4
          %s286 = smul.addr %s29, 6
          %s287 = sadd.s32 %s285, %s286
          %s288 = smul.addr %s287, 128
          %s289 = scalar_lea.hbm %s3, %s288
          %s291 = sshll.u32 %s280, 4
          %s292 = int_to_ptr.vmem [resolvable:$true] %s291
          %294 = dma.hbm_to_vmem [thread:$0]  %s289, 128, %s292, %s277
        $region32: #{tpu_custom_call.1} parent=15 // pred_fallthru
          _
      $region16: #{tpu_custom_call.1} parent=5 // pred_fallthru
        _
      %p295 = scmp.le.s32.totalorder 1, %s22
      %p296 = scmp.lt.s32.totalorder %s22, 3
      %p297 = pnand %p295, %p296
      %p298 = pneg %p297
      // Predicated region
      $region33: #{tpu_custom_call.1} parent=5 // pred_check
        _
      $region34: #{tpu_custom_call.1} parent=5 // pred_check_branch
        %300 = sbr.rel (%p297) target = $region36
      $region35: #{tpu_custom_call.1} parent=5 // pred_region
        %s301 = ssub.s32 %s22, 1
        %s302 = sand.u32 %s58, 1
        %s303 = scalar_lea.sflag [#allocation3], %s302
        %s304 = sand.u32 %s58, 1
        %s305 = smul.addr %s304, 32
        %s306 = scalar_lea.vmem [#allocation2], %s305
        // Predicated region
        $region37: #{tpu_custom_call.1} parent=35 // pred_check
          %p307 = pneg %p71
        $region38: #{tpu_custom_call.1} parent=35 // pred_check_branch
          %309 = sbr.rel (%p307) target = $region40
        $region39: #{tpu_custom_call.1} parent=35 // pred_region
          %310 = dma.done %s303, 512
        $region40: #{tpu_custom_call.1} parent=35 // pred_fallthru
          _
        %s311 = sand.u32 %s27, 1
        %s312 = scalar_lea.sflag [#allocation6], %s311
        %s313 = sand.u32 %s88, 1
        %s314 = smul.addr %s313, 8
        %s315 = scalar_lea.vmem [#allocation5], %s314
        // Predicated region
        $region41: #{tpu_custom_call.1} parent=35 // pred_check
          %p316 = pneg %p101
        $region42: #{tpu_custom_call.1} parent=35 // pred_check_branch
          %318 = sbr.rel (%p316) target = $region44
        $region43: #{tpu_custom_call.1} parent=35 // pred_region
          %319 = dma.done %s312, 128
        $region44: #{tpu_custom_call.1} parent=35 // pred_fallthru
          _
        %s320 = sand.u32 %s27, 1
        %s321 = scalar_lea.sflag [#allocation6], %s320
        %s322 = sand.u32 %s118, 1
        %s323 = smul.addr %s322, 8
        %s324 = scalar_lea.vmem [#allocation7], %s323
        // Predicated region
        $region45: #{tpu_custom_call.1} parent=35 // pred_check
          %p325 = pneg %p131
        $region46: #{tpu_custom_call.1} parent=35 // pred_check_branch
          %327 = sbr.rel (%p325) target = $region48
        $region47: #{tpu_custom_call.1} parent=35 // pred_region
          %328 = dma.done %s321, 128
        $region48: #{tpu_custom_call.1} parent=35 // pred_fallthru
          _
        %s329 = sand.u32 %s148, 1
        %s330 = scalar_lea.sflag [#allocation9], %s329
        %s331 = sand.u32 %s148, 1
        %s332 = smul.addr %s331, 8
        %s333 = scalar_lea.vmem [#allocation8], %s332
        // Predicated region
        $region49: #{tpu_custom_call.1} parent=35 // pred_check
          %p334 = pneg %p161
        $region50: #{tpu_custom_call.1} parent=35 // pred_check_branch
          %336 = sbr.rel (%p334) target = $region52
        $region51: #{tpu_custom_call.1} parent=35 // pred_region
          %337 = dma.done %s330, 128
        $region52: #{tpu_custom_call.1} parent=35 // pred_fallthru
          _
        %s338 = sand.u32 %s58, 1
        %s339 = scalar_lea.sflag [#allocation3], %s338
        %s340 = sand.u32 %s58, 1
        %s341 = smul.addr %s340, 32
        %s342 = scalar_lea.vmem [#allocation2], %s341
        %p343 = pneg %p71
        %p344 = pneg %p68
        %s345 = sand.u32 %s27, 1
        %s346 = scalar_lea.sflag [#allocation6], %s345
        %s347 = sand.u32 %s88, 1
        %s348 = smul.addr %s347, 8
        %s349 = scalar_lea.vmem [#allocation5], %s348
        %p350 = pneg %p101
        %p351 = pneg %p98
        %s352 = sand.u32 %s27, 1
        %s353 = scalar_lea.sflag [#allocation6], %s352
        %s354 = sand.u32 %s118, 1
        %s355 = smul.addr %s354, 8
        %s356 = scalar_lea.vmem [#allocation7], %s355
        %p357 = pneg %p131
        %p358 = pneg %p128
        %s359 = sand.u32 %s148, 1
        %s360 = scalar_lea.sflag [#allocation9], %s359
        %s361 = sand.u32 %s148, 1
        %s362 = smul.addr %s361, 8
        %s363 = scalar_lea.vmem [#allocation8], %s362
        %p364 = pneg %p161
        %p365 = pneg %p158
        %p366 = pneg %p189
        %p367 = pneg %p186
        %s368 = sand.u32 %s176, 1
        %s369 = scalar_lea.sflag [#allocation4], %s368
        %s370 = sand.u32 %s176, 1
        %s371 = smul.addr %s370, 8
        %s372 = scalar_lea.vmem [#allocation10], %s371
        %s373 = sadd.s32 %s33, %s34
        %s374 = sadd.s32 %s33, %s34
        %s375 = sadd.s32 %s33, %s34
        %s376 = sadd.s32 %s33, %s34
        %p377 = scmp.eq.s32.totalorder %s34, 0
        // Predicated region
        $region53: #{tpu_custom_call.1} parent=35 // pred_check
          %p378 = pneg %p377
        $region54: #{tpu_custom_call.1} parent=35 // pred_check_branch
          %380 = sbr.rel (%p378) target = $region56
        $region55: #{tpu_custom_call.1} parent=35 // pred_region
          %381 = vst [vmem:[%s372] sm:$0xff] 0.0
        $region56: #{tpu_custom_call.1} parent=35 // pred_fallthru
          _
        %v382 = vld [vmem:[%s315] sm:$0xff]
        %v383 = vld [vmem:[%s306] sm:$0xff]
        %s384 = scalar_lea.vmem %s306, 8 [#allocation2]
        %v385 = vld [vmem:[%s384] sm:$0xff]
        %v386 = vmax.f32 %v383, %v385
        %s387 = scalar_lea.vmem %s306, 16 [#allocation2]
        %v388 = vld [vmem:[%s387] sm:$0xff]
        %v389 = vmax.f32 %v386, %v388
        %s390 = scalar_lea.vmem %s306, 24 [#allocation2]
        %v391 = vld [vmem:[%s390] sm:$0xff]
        %v392 = vmax.f32 %v389, %v391
        %v393 = vsub.f32 %v383, %v392
        %v394 = vmul.f32 %v393, 1.442695
        %v395 = vpow.pop %v394
        %vm396 = vcmp.eq.s32.totalorder %v382, 0
        %v397 = vsel %vm396, %v383, 0.0
        %v398 = vsub.f32 %v385, %v392
        %v399 = vmul.f32 %v398, 1.442695
        %v400 = vpow.pop %v399
        %v401 = vadd.f32 %v395, %v400
        %vm402 = vcmp.eq.s32.totalorder %v382, 1
        %v403 = vsel %vm402, %v385, %v397
        %v404 = vsub.f32 %v388, %v392
        %v405 = vmul.f32 %v404, 1.442695
        %v406 = vpow.pop %v405
        %v407 = vadd.f32 %v401, %v406
        %vm408 = vcmp.eq.s32.totalorder %v382, 2
        %v409 = vsel %vm408, %v388, %v403
        %v410 = vsub.f32 %v391, %v392
        %v411 = vmul.f32 %v410, 1.442695
        %v412 = vpow.pop %v411
        %v413 = vadd.f32 %v407, %v412
        %vm414 = vcmp.eq.s32.totalorder %v382, 3
        %v415 = vsel %vm414, %v391, %v409
        %v416 = vlog2.pop %v413
        %v417 = vmul.f32 %v416, 0.6931472
        %v418 = vadd.f32 %v392, %v417
        %v419 = vsub.f32 %v418, %v415
        %v420 = vld [vmem:[%s324] sm:$0xff]
        %v421 = vld [vmem:[%s333] sm:$0xff]
        %v422 = vsub.f32 %v421, %v420
        %v423 = vadd.f32 %v421, %v420
        %v424 = vand.u32 2147483647, %v422
        %v425 = vadd.f32 %v424, %v424
        %v426 = vmul.f32 %v422, %v423
        %vm427 = vcmp.ge.f32.partialorder %v426, 0.0
        %v428 = vand.u32 2147483647, %v423
        %vm429 = vcmp.le.f32.partialorder %v425, %v428
        %vm430 = vmand %vm427, %vm429
        %vm431 = vcmp.eq.f32.partialorder %v423, 0.0
        %vm432 = vmor %vm430, %vm431
        %v433 = vsel %vm432, 2.0, 1.0
        %v434 = vmul.f32 %v419, %v433
        %v435 = vlaneseq
        %v436 = vshrl.u32 %v435, 7
        %v437 = vlaneseq
        %v438 = vand.u32 %v437, 127
        %s439 = sadd.s32 %s33, %s34
        %s440 = smul.u32 %s439, 8
        %v441 = vstv %s440
        %v442 = vadd.s32 %v441, %v436
        %v443 = vmul.u32 %v442, 128
        %v444 = vadd.s32 %v443, %v438
        %vm445 = vcmp.lt.s32.totalorder %v444, 256
        %v446 = vsel %vm445, %v434, 0.0
        %v447 = vld [vmem:[%s372] sm:$0xff]
        %v448 = vadd.f32 %v446, 0.0
        %v449 = vadd.f32 %v447, %v448
        %450 = vst [vmem:[%s372] sm:$0xff] %v449
        %s451 = sand.u32 %s176, 1
        %s452 = scalar_lea.sflag [#allocation4], %s451
        %s453 = sand.u32 %s176, 1
        %s454 = smul.addr %s453, 8
        %s455 = scalar_lea.vmem [#allocation10], %s454
        // Predicated region
        $region57: #{tpu_custom_call.1} parent=35 // pred_check
          %p456 = pneg %p186
        $region58: #{tpu_custom_call.1} parent=35 // pred_check_branch
          %458 = sbr.rel (%p456) target = $region60
        $region59: #{tpu_custom_call.1} parent=35 // pred_region
          %s460 = ssub.s32 128, 128
          %461 = vsyncadd %s452, %s460
          %s462 = sadd.s32 %s33, %s32
          %s463 = smul.addr %s462, 128
          %s464 = scalar_lea.hbm %s4, %s463
          %s466 = sshll.u32 %s455, 4
          %s467 = int_to_ptr.vmem [resolvable:$true] %s466
          %469 = dma.vmem_to_hbm [thread:$0]  %s467, 128, %s464, %s452
        $region60: #{tpu_custom_call.1} parent=35 // pred_fallthru
          _
      $region36: #{tpu_custom_call.1} parent=5 // pred_fallthru
        _
      %p470 = scmp.le.s32.totalorder 2, %s22
      // Predicated region
      $region61: #{tpu_custom_call.1} parent=5 // pred_check
        %p471 = pneg %p470
      $region62: #{tpu_custom_call.1} parent=5 // pred_check_branch
        %473 = sbr.rel (%p471) target = $region64
      $region63: #{tpu_custom_call.1} parent=5 // pred_region
        %s474 = ssub.s32 %s22, 2
        // Predicated region
        $region65: #{tpu_custom_call.1} parent=63 // pred_check
          %p475 = pneg %p192
        $region66: #{tpu_custom_call.1} parent=63 // pred_check_branch
          %477 = sbr.rel (%p475) target = $region68
        $region67: #{tpu_custom_call.1} parent=63 // pred_region
          %s478 = sand.u32 %s177, 1
          %s479 = scalar_lea.sflag [#allocation4], %s478
          %s480 = sand.u32 %s177, 1
          %s481 = smul.addr %s480, 8
          %s482 = scalar_lea.vmem [#allocation10], %s481
          %483 = dma.done %s479, 128
        $region68: #{tpu_custom_call.1} parent=63 // pred_fallthru
          _
      $region64: #{tpu_custom_call.1} parent=5 // pred_fallthru
        _
    $region6: #{tpu_custom_call.1} parent=1 // loop_footer
      %s26 = sadd.s32 1, %s22
    $region7: #{tpu_custom_call.1} parent=1 // loop_footer_branch
      %21 = sbr.rel target = $region3
    $region8: #{tpu_custom_call.1} parent=1 // loop_exit
      _
    %484 = vsyncpa [#allocation3], 1
    %s485 = scalar_lea.sflag [#allocation3], 1
    %486 = vsyncpa %s485, 1
    %487 = vsyncpa [#allocation6], 1
    %s488 = scalar_lea.sflag [#allocation6], 1
    %489 = vsyncpa %s488, 1
    %490 = vsyncpa [#allocation9], 1
    %s491 = scalar_lea.sflag [#allocation9], 1
    %492 = vsyncpa %s491, 1
    %493 = vsyncpa [#allocation4], 1
    %s494 = scalar_lea.sflag [#allocation4], 1
    %495 = vsyncpa %s494, 1

</llo_original>
